<compile_context>
chip_gen: v5e
topology: v5e:2x2
jax: 0.10.0
libtpu: 0.0.40
codegen_flags: <defaults>
</compile_context>

<pallas_src>
import math

import jax
import jax.numpy as jnp
from jax.experimental import pallas as pl
from jax.experimental.pallas import tpu as pltpu


def _round_up(x, m):
    return ((x + m - 1) // m) * m


def _pick_block_n(dim, budget_bytes=28 * 1024 * 1024):
    """Largest n-tile whose double-buffered (dim, block_n) f32 w1 slab fits the
    VMEM budget.  Returns (block_n, padded_n)."""
    max_bn = max(128, budget_bytes // (2 * dim * 4))
    if dim <= max_bn:
        return dim, dim                      # full output dim, no padding
    n_pad = _round_up(dim, 128)
    bn = min((max_bn // 128) * 128, n_pad)
    while n_pad % bn != 0:                   # largest 128-multiple divisor
        bn -= 128
    return bn, n_pad


def _seq_head_kernel(x_ref, w1_ref, b1_ref, w2_ref, b2_ref, out_ref, acc_ref):
    # x_ref   : VMEM (TB, D)       gathered last-token rows for this batch tile
    # w1_ref  : VMEM (D, block_n)  dense weight tile, (in, out) layout
    # b1_ref  : VMEM (1, block_n)  dense bias tile
    # w2_ref  : VMEM (1, block_n)  out_proj weight tile (lane-dense row)
    # b2_ref  : VMEM (1, 1)        out_proj bias
    # out_ref : VMEM (TB, 1)       per-batch-tile outputs
    # acc_ref : VMEM (TB, 1) f32   out_proj partial sums across n tiles
    n = pl.program_id(1)

    @pl.when(n == 0)
    def _():
        acc_ref[...] = jnp.zeros_like(acc_ref)

    # dense -> tanh on this output-column tile (MXU + EUP; dropout p=0 is id)
    y = jnp.tanh(
        jnp.dot(x_ref[...], w1_ref[...], preferred_element_type=jnp.float32)
        + b1_ref[...]
    )                                                        # (TB, block_n)

    # out_proj (dim -> 1) as VPU multiply + lane reduction (no N=1 matmul)
    acc_ref[...] += jnp.sum(y * w2_ref[...], axis=-1, keepdims=True)  # (TB, 1)

    @pl.when(n == pl.num_programs(1) - 1)
    def _():
        out_ref[...] = (acc_ref[...] + b2_ref[...]).astype(out_ref.dtype)


def cdgpt_sequence_task_head(input_ids, hiddens, w1, b1, w2_row, b2,
                             *, pad_id=2, block_n=None):
    """input_ids: (bs, S) int32; hiddens: (bs, S, D) f32 -> (bs,) f32.

    w1: (D, D) (in, out) layout; b1: (1, D); w2_row: (1, D); b2: (1, 1).
    """
    bs, seq_len = input_ids.shape
    dim = hiddens.shape[-1]

    # --- cheap XLA preamble: sequence lengths + last-token gather -----------
    lengths = jnp.sum((input_ids != pad_id).astype(jnp.int32), axis=-1) - 1
    # all-pad rows give -1 -> wrap to last position (torch's hiddens[b, -1])
    lengths = jnp.where(lengths < 0, lengths + seq_len, lengths)
    x = jnp.take_along_axis(hiddens, lengths[:, None, None], axis=1)[:, 0, :]

    # --- batch tiling: batch is the M dim of one GEMM -----------------------
    bs8 = _round_up(bs, 8)                   # f32 sublane multiple
    if bs8 <= 128:
        tb, bs_pad = bs8, bs8
    else:
        tb, bs_pad = 128, _round_up(bs, 128)
    if bs_pad != bs:
        x = jnp.pad(x, ((0, bs_pad - bs), (0, 0)))

    # --- dense-output tiling, VMEM-budgeted; pad N to 128-multiple if needed
    if block_n is None:
        block_n, n_pad = _pick_block_n(dim)
    else:
        n_pad = _round_up(dim, block_n)
    if n_pad != dim:
        # zero-padded w2 columns contribute 0 to the out_proj sum -> exact
        w1 = jnp.pad(w1, ((0, 0), (0, n_pad - dim)))
        b1 = jnp.pad(b1, ((0, 0), (0, n_pad - dim)))
        w2_row = jnp.pad(w2_row, ((0, 0), (0, n_pad - dim)))
    num_n = n_pad // block_n

    grid_spec = pltpu.PrefetchScalarGridSpec(
        num_scalar_prefetch=0,
        grid=(bs_pad // tb, num_n),
        in_specs=[
            pl.BlockSpec((tb, dim), lambda i, n: (i, 0)),        # activations
            pl.BlockSpec((dim, block_n), lambda i, n: (0, n)),   # w1 tile
            pl.BlockSpec((1, block_n), lambda i, n: (0, n)),     # b1 tile
            pl.BlockSpec((1, block_n), lambda i, n: (0, n)),     # w2 tile
            pl.BlockSpec((1, 1), lambda i, n: (0, 0)),           # b2
        ],
        out_specs=pl.BlockSpec((tb, 1), lambda i, n: (i, 0)),
        scratch_shapes=[pltpu.VMEM((tb, 1), jnp.float32)],
    )

    cost = pl.CostEstimate(
        flops=2 * bs_pad * dim * n_pad + 2 * bs_pad * n_pad,
        transcendentals=bs_pad * n_pad,
        bytes_accessed=4 * (dim * n_pad + bs_pad * dim + 2 * n_pad
                            + bs_pad + 1),
    )

    out = pl.pallas_call(
        _seq_head_kernel,
        out_shape=jax.ShapeDtypeStruct((bs_pad, 1), jnp.float32),
        grid_spec=grid_spec,
        compiler_params=pltpu.CompilerParams(
            dimension_semantics=("parallel", "arbitrary"),
            vmem_limit_bytes=48 * 1024 * 1024,   # fits v7x's 64 MiB with headroom
        ),
        cost_estimate=cost,
    )(x, w1, b1, w2_row, b2)

    return out[:bs, 0]  # squeeze(-1) -> (bs,)


if __name__ == "__main__":
    bs, seq_len, dim = 4, 8, 32
    pad_id = 2

    key = jax.random.PRNGKey(0)
    k_h, k_w1, k_b1, k_w2, k_b2 = jax.random.split(key, 5)

    # hidden states [bs, seq, dim]
    hiddens = jax.random.normal(k_h, (bs, seq_len, dim), dtype=jnp.float32)

    # token ids: valid tokens (!= pad_id) followed by pad_id padding; the last
    # row is all-pad to exercise torch's -1 (wrap-to-last) behaviour.
    input_ids = jnp.array(
        [[5, 7, 3, 9, 4, 6, pad_id, pad_id],                      # 6 valid -> 5
         [8, 3, 5, 5, 9, 7, 4, 6],                                # 8 valid -> 7
         [1, 4, 9, pad_id, pad_id, pad_id, pad_id, pad_id],       # 3 valid -> 2
         [pad_id] * 8],                                           # 0 valid -> -1 -> 7
        dtype=jnp.int32)

    # deterministic parameter init (nn.Linear(dim, dim) / nn.Linear(dim, 1));
    # dense weight stored as (in_features, out_features), out_proj weight as a
    # lane-dense (1, dim) row.
    bound = 1.0 / math.sqrt(dim)
    w1 = jax.random.uniform(k_w1, (dim, dim), minval=-bound, maxval=bound,
                            dtype=jnp.float32)
    b1 = jax.random.uniform(k_b1, (1, dim), minval=-bound, maxval=bound,
                            dtype=jnp.float32)
    w2_row = jax.random.uniform(k_w2, (1, dim), minval=-bound, maxval=bound,
                                dtype=jnp.float32)
    b2 = jax.random.uniform(k_b2, (1, 1), minval=-bound, maxval=bound,
                            dtype=jnp.float32)

    res = cdgpt_sequence_task_head(input_ids, hiddens, w1, b1, w2_row, b2,
                                   pad_id=pad_id)
    res = jax.block_until_ready(res)

    # pure-JAX reference of the PyTorch forward
    seq_idx = jnp.sum((input_ids != pad_id).astype(jnp.int32), axis=-1) - 1
    gathered = hiddens[jnp.arange(bs), seq_idx]                   # (bs, dim)
    ref = jnp.sum(jnp.tanh(gathered @ w1 + b1) * w2_row, axis=-1) + b2[0, 0]

    assert res.shape == (bs,), res.shape
    assert jnp.allclose(res, ref, atol=1e-5, rtol=1e-5), (res, ref)
    print("KERNEL_OK")
</pallas_src>

<mosaic_0001>
module attributes {stable_mosaic.version = 11 : i64} {
  func.func @_seq_head_kernel(%arg0: i32, %arg1: i32, %arg2: memref<8x32xf32, #tpu.memory_space<vmem>>, %arg3: memref<32x32xf32, #tpu.memory_space<vmem>>, %arg4: memref<1x32xf32, #tpu.memory_space<vmem>>, %arg5: memref<1x32xf32, #tpu.memory_space<vmem>>, %arg6: memref<1x1xf32, #tpu.memory_space<vmem>>, %arg7: memref<8x1xf32, #tpu.memory_space<vmem>>, %arg8: memref<8x1xf32, #tpu.memory_space<vmem>>) attributes {dimension_semantics = [#tpu.dimension_semantics<parallel>, #tpu.dimension_semantics<arbitrary>], iteration_bounds = array<i64: 1, 1>, scalar_prefetch = 0 : i64, scratch_operands = 1 : i64, tpu.core_type = #tpu.core_type<tc>, window_params = [{transform_indices = @transform_0, window_bounds = array<i64: 8, 32>}, {transform_indices = @transform_1, window_bounds = array<i64: 32, 32>}, {transform_indices = @transform_2, window_bounds = array<i64: 1, 32>}, {transform_indices = @transform_3, window_bounds = array<i64: 1, 32>}, {pipeline_mode = #tpu.pipeline_mode<synchronous>, transform_indices = @transform_4, window_bounds = array<i64: 1, 1>}, {transform_indices = @transform_5, window_bounds = array<i64: 8, 1>}]} {
    %c0_i32 = arith.constant 0 : i32
    %0 = arith.cmpi eq, %arg1, %c0_i32 : i32
    %1 = arith.extui %0 : i1 to i32
    %c0_i32_0 = arith.constant 0 : i32
    %2 = arith.cmpi ne, %1, %c0_i32_0 : i32
    scf.if %2 {
      %cst_15 = arith.constant 0.000000e+00 : f32
      %21 = vector.broadcast %cst_15 : f32 to vector<8x1xf32>
      %c0_16 = arith.constant 0 : index
      %c0_17 = arith.constant 0 : index
      %22 = vector.load %arg8[%c0_16, %c0_17] : memref<8x1xf32, #tpu.memory_space<vmem>>, vector<8x1xf32>
      tpu.vector_store %arg8[%c0_16, %c0_17], %21 {strides = array<i32>} : memref<8x1xf32, #tpu.memory_space<vmem>>, vector<8x1xf32>,
    } else {
    }
    %c0 = arith.constant 0 : index
    %c0_1 = arith.constant 0 : index
    %3 = vector.load %arg2[%c0, %c0_1] : memref<8x32xf32, #tpu.memory_space<vmem>>, vector<8x32xf32>
    %c0_2 = arith.constant 0 : index
    %c0_3 = arith.constant 0 : index
    %4 = vector.load %arg3[%c0_2, %c0_3] : memref<32x32xf32, #tpu.memory_space<vmem>>, vector<32x32xf32>
    %cst = arith.constant dense<0.000000e+00> : vector<8x32xf32>
    %5 = tpu.matmul %3, %4, %cst {dimension_numbers = #tpu.dot_dimension_numbers<[1], [0], [0], [1], [0, 0, 1, 1], [], []>} : vector<8x32xf32>, vector<32x32xf32>, vector<8x32xf32> -> vector<8x32xf32>
    %c0_4 = arith.constant 0 : index
    %c0_5 = arith.constant 0 : index
    %6 = vector.load %arg4[%c0_4, %c0_5] : memref<1x32xf32, #tpu.memory_space<vmem>>, vector<1x32xf32>
    %7 = vector.broadcast %6 : vector<1x32xf32> to vector<8x32xf32>
    %8 = arith.addf %5, %7 : vector<8x32xf32>
    %9 = math.tanh %8 : vector<8x32xf32>
    %c0_6 = arith.constant 0 : index
    %c0_7 = arith.constant 0 : index
    %10 = vector.load %arg8[%c0_6, %c0_7] : memref<8x1xf32, #tpu.memory_space<vmem>>, vector<8x1xf32>
    %c0_8 = arith.constant 0 : index
    %c0_9 = arith.constant 0 : index
    %11 = vector.load %arg5[%c0_8, %c0_9] : memref<1x32xf32, #tpu.memory_space<vmem>>, vector<1x32xf32>
    %12 = vector.broadcast %11 : vector<1x32xf32> to vector<8x32xf32>
    %13 = arith.mulf %9, %12 : vector<8x32xf32>
    %cst_10 = arith.constant dense<0.000000e+00> : vector<8xf32>
    %14 = vector.multi_reduction <add>, %13, %cst_10 [1] : vector<8x32xf32> to vector<8xf32>
    %15 = vector.shape_cast %14 : vector<8xf32> to vector<8x1xf32>
    %16 = arith.addf %10, %15 : vector<8x1xf32>
    %c0_11 = arith.constant 0 : index
    %c0_12 = arith.constant 0 : index
    %17 = vector.load %arg8[%c0_11, %c0_12] : memref<8x1xf32, #tpu.memory_space<vmem>>, vector<8x1xf32>
    tpu.vector_store %arg8[%c0_11, %c0_12], %16 {strides = array<i32>} : memref<8x1xf32, #tpu.memory_space<vmem>>, vector<8x1xf32>,
    %c0_i32_13 = arith.constant 0 : i32
    %18 = arith.cmpi eq, %arg1, %c0_i32_13 : i32
    %19 = arith.extui %18 : i1 to i32
    %c0_i32_14 = arith.constant 0 : i32
    %20 = arith.cmpi ne, %19, %c0_i32_14 : i32
    scf.if %20 {
      %c0_15 = arith.constant 0 : index
      %c0_16 = arith.constant 0 : index
      %21 = vector.load %arg8[%c0_15, %c0_16] : memref<8x1xf32, #tpu.memory_space<vmem>>, vector<8x1xf32>
      %c0_17 = arith.constant 0 : index
      %c0_18 = arith.constant 0 : index
      %22 = vector.load %arg6[%c0_17, %c0_18] : memref<1x1xf32, #tpu.memory_space<vmem>>, vector<1x1xf32>
      %23 = vector.broadcast %22 : vector<1x1xf32> to vector<8x1xf32>
      %24 = arith.addf %21, %23 : vector<8x1xf32>
      %c0_19 = arith.constant 0 : index
      %c0_20 = arith.constant 0 : index
      %25 = vector.load %arg7[%c0_19, %c0_20] : memref<8x1xf32, #tpu.memory_space<vmem>>, vector<8x1xf32>
      tpu.vector_store %arg7[%c0_19, %c0_20], %24 {strides = array<i32>} : memref<8x1xf32, #tpu.memory_space<vmem>>, vector<8x1xf32>,
    } else {
    }
    return
  }
  func.func @transform_0(%arg0: i32, %arg1: i32) -> (i32, i32) {
    %c0_i32 = arith.constant 0 : i32
    %c0_i32_0 = arith.constant 0 : i32
    return %arg0, %c0_i32 : i32, i32
  }
  func.func @transform_1(%arg0: i32, %arg1: i32) -> (i32, i32) {
    %c0_i32 = arith.constant 0 : i32
    %c0_i32_0 = arith.constant 0 : i32
    return %c0_i32, %arg1 : i32, i32
  }
  func.func @transform_2(%arg0: i32, %arg1: i32) -> (i32, i32) {
    %c0_i32 = arith.constant 0 : i32
    %c0_i32_0 = arith.constant 0 : i32
    return %c0_i32, %arg1 : i32, i32
  }
  func.func @transform_3(%arg0: i32, %arg1: i32) -> (i32, i32) {
    %c0_i32 = arith.constant 0 : i32
    %c0_i32_0 = arith.constant 0 : i32
    return %c0_i32, %arg1 : i32, i32
  }
  func.func @transform_4(%arg0: i32, %arg1: i32) -> (i32, i32) {
    %c0_i32 = arith.constant 0 : i32
    %c0_i32_0 = arith.constant 0 : i32
    %c0_i32_1 = arith.constant 0 : i32
    return %c0_i32, %c0_i32_0 : i32, i32
  }
  func.func @transform_5(%arg0: i32, %arg1: i32) -> (i32, i32) {
    %c0_i32 = arith.constant 0 : i32
    %c0_i32_0 = arith.constant 0 : i32
    return %arg0, %c0_i32 : i32, i32
  }
}

</mosaic_0001>

<llo_original>
// kernel: tpu_custom_call.1
$region0: #{tpu_custom_call.1}
  #allocation0 [shape = 'u32[]', space=smem, size = 0x4, offset = 0x4, fixed_abs, tag = 'smem constant byte address 0x4 - core index']
  #allocation1 [shape = 'u32[72,128]{1,0:T(1,128)}', space=vmem, size = 0x9000, scoped, tag = 'internal scratch']
  #allocation2 [shape = 'f32[8,1]{1,0:T(8,128)}', space=vmem, size = 0x1000, scoped, tag = 'scratch operand']
  #allocation3 [shape = 'f32[1,1]{1,0:T(1,128)S(1)}', space=vmem, size = 0x200, scoped, tag = 'scoped memory for tpu_custom_call.1']
  %s0 = inlined_call_operand.hbm [shape: f32[8,32], index: 0, kind: input, shape index: {}]
  %s1 = inlined_call_operand.hbm [shape: f32[32,32], index: 1, kind: input, shape index: {}]
  %s2 = inlined_call_operand.vmem [shape: f32[1,32], index: 2, kind: input, shape index: {}]
  %s3 = inlined_call_operand.vmem [shape: f32[1,32], index: 3, kind: input, shape index: {}]
  %s4 = inlined_call_operand.<no memory space> [shape: f32[1,1], index: 4, kind: input, shape index: {}]
  %s5 = inlined_call_operand.vmem [shape: f32[8,1], index: 5, kind: output, shape index: {}]
  %s6 = sld [smem:[#allocation0]]
  $region46: #{tpu_custom_call.1} parent=0
    _
  %s8 = ssub.s32 1, %s6
  %s9 = scalar_select 0, %s8, %s6
  %v10 = vstv %s4
  %11 = vst [vmem:[#allocation3] sm:$0x1] %v10
  $region1: #{tpu_custom_call.1} parent=0
    #allocation4 [shape = 'u8[4096]{0}', space=vmem, size = 0x1000, scoped, tag = 'input window, operand 0, single buffered']
    #allocation5 [shape = 's32[1]{0}', space=sflag, size = 0x4, scoped, tag = 'scoped memory for tpu_custom_call.1']
    #allocation6 [shape = 'u8[16384]{0}', space=vmem, size = 0x4000, scoped, tag = 'input window, operand 1, single buffered']
    #allocation7 [shape = 's32[1]{0}', space=sflag, size = 0x4, scoped, tag = 'scoped memory for tpu_custom_call.1']
    %12 = vsyncpa [#allocation5], 0
    %13 = vsyncpa [#allocation7], 0
    // Predicated region
    $region2: #{tpu_custom_call.1} parent=1 // pred_check
      _
    $region3: #{tpu_custom_call.1} parent=1 // pred_check_branch
      %15 = sbr.rel (0) target = $region5
    $region4: #{tpu_custom_call.1} parent=1 // pred_region
      %17 = vsyncadd [#allocation5], 0
      %s19 = sshll.u32 %s0, 4
      %s20 = int_to_ptr.hbm [resolvable:$true] %s19
      %s21 = sshll.u32 [#allocation4], 4
      %s22 = int_to_ptr.vmem [resolvable:$true] %s21
      %24 = dma.hbm_to_vmem [thread:$0]  %s20, 128, %s22, [#allocation5]
    $region5: #{tpu_custom_call.1} parent=1 // pred_fallthru
      _
    // Predicated region
    $region6: #{tpu_custom_call.1} parent=1 // pred_check
      _
    $region7: #{tpu_custom_call.1} parent=1 // pred_check_branch
      %26 = sbr.rel (0) target = $region9
    $region8: #{tpu_custom_call.1} parent=1 // pred_region
      %28 = vsyncadd [#allocation7], 0
      %s29 = sshll.u32 %s1, 4
      %s30 = int_to_ptr.hbm [resolvable:$true] %s29
      %s31 = sshll.u32 [#allocation6], 4
      %s32 = int_to_ptr.vmem [resolvable:$true] %s31
      %37 = dma.hbm_to_vmem [thread:$0]  %s30, 512, %s32, [#allocation7], 128, 128, 8
    $region9: #{tpu_custom_call.1} parent=1 // pred_fallthru
      _
    // Predicated region
    $region10: #{tpu_custom_call.1} parent=1 // pred_check
      _
    $region11: #{tpu_custom_call.1} parent=1 // pred_check_branch
      %39 = sbr.rel (0) target = $region13
    $region12: #{tpu_custom_call.1} parent=1 // pred_region
      _
    $region13: #{tpu_custom_call.1} parent=1 // pred_fallthru
      _
    // Predicated region
    $region14: #{tpu_custom_call.1} parent=1 // pred_check
      _
    $region15: #{tpu_custom_call.1} parent=1 // pred_check_branch
      %41 = sbr.rel (0) target = $region17
    $region16: #{tpu_custom_call.1} parent=1 // pred_region
      _
    $region17: #{tpu_custom_call.1} parent=1 // pred_fallthru
      _
    // Predicated region
    $region18: #{tpu_custom_call.1} parent=1 // pred_check
      _
    $region19: #{tpu_custom_call.1} parent=1 // pred_check_branch
      %43 = sbr.rel (0) target = $region21
    $region20: #{tpu_custom_call.1} parent=1 // pred_region
      _
    $region21: #{tpu_custom_call.1} parent=1 // pred_fallthru
      _
    // Predicated region
    $region22: #{tpu_custom_call.1} parent=1 // pred_check
      _
    $region23: #{tpu_custom_call.1} parent=1 // pred_check_branch
      %45 = sbr.rel (0) target = $region25
    $region24: #{tpu_custom_call.1} parent=1 // pred_region
      %47 = dma.done [#allocation5], 128
    $region25: #{tpu_custom_call.1} parent=1 // pred_fallthru
      _
    // Predicated region
    $region26: #{tpu_custom_call.1} parent=1 // pred_check
      _
    $region27: #{tpu_custom_call.1} parent=1 // pred_check_branch
      %49 = sbr.rel (0) target = $region29
    $region28: #{tpu_custom_call.1} parent=1 // pred_region
      %51 = dma.done [#allocation7], 512
    $region29: #{tpu_custom_call.1} parent=1 // pred_fallthru
      _
    %p52 = scmp.eq.s32.totalorder 0, 0
    // Predicated region
    $region30: #{tpu_custom_call.1} parent=1 // pred_check
      %p53 = pneg %p52
    $region31: #{tpu_custom_call.1} parent=1 // pred_check_branch
      %55 = sbr.rel (%p53) target = $region33
    $region32: #{tpu_custom_call.1} parent=1 // pred_region
      %vm56 = vcmask 7168
      %57 = vst.msk [vmem:[#allocation2] sm:$0xff] %vm56, 0.0
    $region33: #{tpu_custom_call.1} parent=1 // pred_fallthru
      _
    %v58 = vld [vmem:[#allocation4] sm:$0xff]
    %v59 = vld [vmem:[#allocation6] sm:$0xff]
    %v60 = vld [vmem:[#allocation6 + $0x8] sm:$0xff]
    %v61 = vld [vmem:[#allocation6 + $0x10] sm:$0xff]
    %v62 = vld [vmem:[#allocation6 + $0x18] sm:$0xff]
    %v63 = vld [vmem:[%s2] sm:$0x1]
    %v65 = vperm.slane %v63, 0
    %vm67 = vcmask 261120
    %v69 = vsel %vm67, %v58, 0
    %71 = vmatpush.msra.mxu0 0.0
    %72 = vmatpush.msra.mxu0 0.0
    %73 = vmatpush.msra.mxu0 0.0
    %74 = vmatpush.msra.mxu0 0.0
    %75 = vmatpush.msra.mxu0 0.0
    %76 = vmatpush.msra.mxu0 0.0
    %77 = vmatpush.msra.mxu0 0.0
    %78 = vmatpush.msra.mxu0 0.0
    %79 = vmatpush.msra.mxu0 0.0
    %80 = vmatpush.msra.mxu0 0.0
    %81 = vmatpush.msra.mxu0 0.0
    %82 = vmatpush.msra.mxu0 0.0
    %83 = vmatpush.msra.mxu0 %v62
    %84 = vmatpush.msra.mxu0 %v61
    %85 = vmatpush.msra.mxu0 %v60
    %86 = vmatpush.msra.mxu0 %v59
    %87 = vmatmul.f32.gmra.mxu0 %v69
    %v88 = vpop.f32.mrf.mxu0
    %v89 = vadd.f32 %v65, %v88
    %90 = vdwg.mxu0
    %v91 = vtanh.pop %v89
    %v92 = vld [vmem:[#allocation2] sm:$0xff]
    %v93 = vld [vmem:[%s3] sm:$0x1]
    %v95 = vperm.slane %v93, 0
    %v97 = vmul.f32 %v91, %v95
    %v98 = vsel %vm67, %v97, 0.0
    %99 = vadd.xlane.f32.xlu0 %v98
    %v100 = vpop.xlane.xlu0 %99
    %v101 = vadd.f32 %v92, %v100
    %vm102 = vcmask 7168
    %103 = vst.msk [vmem:[#allocation2] sm:$0xff] %vm102, %v101
    // Predicated region
    $region34: #{tpu_custom_call.1} parent=1 // pred_check
      %p104 = pneg %p52
    $region35: #{tpu_custom_call.1} parent=1 // pred_check_branch
      %106 = sbr.rel (%p104) target = $region37
    $region36: #{tpu_custom_call.1} parent=1 // pred_region
      %v107 = vld [vmem:[#allocation2] sm:$0xff]
      %v108 = vld [vmem:[#allocation3] sm:$0x1]
      %v110 = vperm.slane %v108, 0
      %v112 = vadd.f32 %v107, %v110
      %113 = vst.msk [vmem:[%s5] sm:$0xff] %vm102, %v112
    $region37: #{tpu_custom_call.1} parent=1 // pred_fallthru
      _
    // Predicated region
    $region38: #{tpu_custom_call.1} parent=1 // pred_check
      _
    $region39: #{tpu_custom_call.1} parent=1 // pred_check_branch
      %115 = sbr.rel (0) target = $region41
    $region40: #{tpu_custom_call.1} parent=1 // pred_region
      _
    $region41: #{tpu_custom_call.1} parent=1 // pred_fallthru
      _
    // Predicated region
    $region42: #{tpu_custom_call.1} parent=1 // pred_check
      _
    $region43: #{tpu_custom_call.1} parent=1 // pred_check_branch
      %117 = sbr.rel (0) target = $region45
    $region44: #{tpu_custom_call.1} parent=1 // pred_region
      _
    $region45: #{tpu_custom_call.1} parent=1 // pred_fallthru
      _
    %118 = vsyncpa [#allocation5], 1
    %119 = vsyncpa [#allocation7], 1

</llo_original>
